<compile_context>
chip_gen: v5e
topology: v5e:2x2
jax: 0.10.0
libtpu: 0.0.40
codegen_flags: <defaults>
</compile_context>

<pallas_src>
import math

import jax
import jax.numpy as jnp
from jax.experimental import pallas as pl
from jax.experimental.pallas import tpu as pltpu


def _round_up(a: int, b: int) -> int:
    return ((a + b - 1) // b) * b


def _groupwise_linear_kernel(x_ref, w_ref, b_ref, o_ref):
    # x_ref: (TB, TC, D)   w_ref: (TC, D)   b_ref: (1, TC)   o_ref: (TB, TC)
    x = x_ref[...]
    w = w_ref[...]
    prod = x * w[None, :, :]                        # VPU multiply, native dtype
    s = jnp.sum(prod, axis=-1, dtype=jnp.float32)   # lane reduce, f32 accumulate
    s = s + b_ref[...].astype(jnp.float32)          # bias add before downcast
    o_ref[...] = s.astype(o_ref.dtype)


def groupwise_linear(x, W, b, *, batch_tile=None, class_tile=None,
                     vmem_limit_bytes=48 * 1024 * 1024):
    """GroupWiseLinear forward. x: (B, C, D); W: (C, D) or (1, C, D); b: (1, C).

    Returns (B, C) in x.dtype.
    """
    if W.ndim == 3:                 # accept the PyTorch (1, C, D) parameter layout
        W = W[0]
    B, C, D = x.shape
    assert W.shape == (C, D)
    assert b.shape == (1, C)

    x_itemsize = jnp.dtype(x.dtype).itemsize

    # ---------------- tile selection ----------------
    Dp = _round_up(D, 128)          # lane axis
    Cp0 = _round_up(C, 8)           # sublane axis of the x block

    ROW_BUDGET = 1 * 1024 * 1024    # bytes of one (class_tile, Dp) slab per batch row
    if class_tile is None:
        if Cp0 * Dp * x_itemsize <= ROW_BUDGET or Cp0 <= 128:
            class_tile = Cp0        # whole class axis resident per step
        else:
            # when tiled, class_tile must be a multiple of 128 (output lane axis)
            class_tile = max(128, (ROW_BUDGET // (Dp * x_itemsize)) // 128 * 128)
    Cp = Cp0 if class_tile == Cp0 else _round_up(Cp0, class_tile)

    if batch_tile is None:
        row_bytes = class_tile * Dp * x_itemsize
        bt_cap = max(1, (4 * 1024 * 1024) // row_bytes)    # ~4 MiB x-tile target
        bt_floor = max(1, (1 * 1024 * 1024) // row_bytes)  # keep tiles >= ~1 MiB
        bt_steps = -(-B // 8)                              # aim for >= 8 grid steps
        batch_tile = min(bt_cap, max(bt_steps, bt_floor), B)
    batch_tile = max(8, (batch_tile // 8) * 8)             # sublane-aligned out block
    batch_tile = min(batch_tile, _round_up(B, 8))
    Bp = _round_up(B, batch_tile)

    # ---------------- pad to dense tiles (zero padding is exact) ----------------
    if (Bp, Cp, Dp) != (B, C, D):
        x = jnp.pad(x, ((0, Bp - B), (0, Cp - C), (0, Dp - D)))
    if (Cp, Dp) != (C, D):
        W = jnp.pad(W, ((0, Cp - C), (0, Dp - D)))
    if Cp != C:
        b = jnp.pad(b, ((0, 0), (0, Cp - C)))

    grid = (Bp // batch_tile, Cp // class_tile)
    resident_weights = grid[1] == 1   # W / bias index maps constant over the grid

    def build(single_buffer_resident):
        res_kwargs = {}
        if single_buffer_resident:
            res_kwargs = dict(pipeline_mode=pl.Buffered(1))
        return pl.pallas_call(
            _groupwise_linear_kernel,
            out_shape=jax.ShapeDtypeStruct((Bp, Cp), x.dtype),
            grid_spec=pltpu.PrefetchScalarGridSpec(
                num_scalar_prefetch=0,
                grid=grid,
                in_specs=[
                    pl.BlockSpec((batch_tile, class_tile, Dp),
                                 lambda i, j: (i, j, 0)),                # x tile
                    pl.BlockSpec((class_tile, Dp), lambda i, j: (j, 0),
                                 **res_kwargs),                          # W
                    pl.BlockSpec((1, class_tile), lambda i, j: (0, j),
                                 **res_kwargs),                          # bias
                ],
                out_specs=pl.BlockSpec((batch_tile, class_tile),
                                       lambda i, j: (i, j)),
            ),
            compiler_params=pltpu.CompilerParams(
                dimension_semantics=("parallel", "parallel"),
                vmem_limit_bytes=vmem_limit_bytes,
            ),
        )

    if resident_weights and hasattr(pl, "Buffered"):
        try:
            out = build(True)(x, W, b)
        except Exception:
            # pipeline_mode=Buffered(1) unsupported on this jax build: fall back
            # to default double-buffered resident weights (correct, more VMEM).
            out = build(False)(x, W, b)
    else:
        out = build(False)(x, W, b)

    return out[:B, :C]


def init_groupwise_linear_params(key, num_class, hidden_dim, dtype=jnp.float32):
    """Matches reset_parameters: U(-stdv, stdv), stdv = 1/sqrt(hidden_dim)."""
    stdv = 1.0 / math.sqrt(hidden_dim)
    kw, kb = jax.random.split(key)
    W = jax.random.uniform(kw, (num_class, hidden_dim), dtype=dtype,
                           minval=-stdv, maxval=stdv)
    b = jax.random.uniform(kb, (1, num_class), dtype=dtype,
                           minval=-stdv, maxval=stdv)
    return W, b


if __name__ == "__main__":
    key = jax.random.PRNGKey(0)
    k_x, k_p = jax.random.split(key)

    B, num_class, hidden_dim = 2, 8, 32
    x = jax.random.normal(k_x, (B, num_class, hidden_dim), dtype=jnp.float32)
    W, b = init_groupwise_linear_params(k_p, num_class, hidden_dim)

    out = groupwise_linear(x, W, b)
    out = jax.block_until_ready(out)

    # Reference check in plain JAX (same math as the PyTorch forward).
    ref = jnp.sum(W[None, :, :] * x, axis=-1) + b
    assert out.shape == (B, num_class)
    assert jnp.allclose(out, ref, atol=1e-5, rtol=1e-5), "mismatch vs reference"

    print("KERNEL_OK")
</pallas_src>

<mosaic_0001>
module attributes {stable_mosaic.version = 11 : i64} {
  func.func @_groupwise_linear_kernel(%arg0: i32, %arg1: i32, %arg2: memref<8x8x128xf32, #tpu.memory_space<vmem>>, %arg3: memref<8x128xf32, #tpu.memory_space<vmem>>, %arg4: memref<1x8xf32, #tpu.memory_space<vmem>>, %arg5: memref<8x8xf32, #tpu.memory_space<vmem>>) attributes {dimension_semantics = [#tpu.dimension_semantics<parallel>, #tpu.dimension_semantics<parallel>], iteration_bounds = array<i64: 1, 1>, scalar_prefetch = 0 : i64, scratch_operands = 0 : i64, tpu.core_type = #tpu.core_type<tc>, window_params = [{transform_indices = @transform_0, window_bounds = array<i64: 8, 8, 128>}, {pipeline_mode = #tpu.pipeline_mode<synchronous>, transform_indices = @transform_1, window_bounds = array<i64: 8, 128>}, {pipeline_mode = #tpu.pipeline_mode<synchronous>, transform_indices = @transform_2, window_bounds = array<i64: 1, 8>}, {transform_indices = @transform_3, window_bounds = array<i64: 8, 8>}]} {
    %c0 = arith.constant 0 : index
    %c0_0 = arith.constant 0 : index
    %c0_1 = arith.constant 0 : index
    %0 = vector.load %arg2[%c0, %c0_0, %c0_1] : memref<8x8x128xf32, #tpu.memory_space<vmem>>, vector<8x8x128xf32>
    %c0_2 = arith.constant 0 : index
    %c0_3 = arith.constant 0 : index
    %1 = vector.load %arg3[%c0_2, %c0_3] : memref<8x128xf32, #tpu.memory_space<vmem>>, vector<8x128xf32>
    %2 = vector.shape_cast %1 : vector<8x128xf32> to vector<1x8x128xf32>
    %3 = vector.broadcast %2 : vector<1x8x128xf32> to vector<8x8x128xf32>
    %4 = arith.mulf %0, %3 : vector<8x8x128xf32>
    %cst = arith.constant dense<0.000000e+00> : vector<8x8xf32>
    %5 = vector.multi_reduction <add>, %4, %cst [2] : vector<8x8x128xf32> to vector<8x8xf32>
    %c0_4 = arith.constant 0 : index
    %c0_5 = arith.constant 0 : index
    %6 = vector.load %arg4[%c0_4, %c0_5] : memref<1x8xf32, #tpu.memory_space<vmem>>, vector<1x8xf32>
    %7 = vector.broadcast %6 : vector<1x8xf32> to vector<8x8xf32>
    %8 = arith.addf %5, %7 : vector<8x8xf32>
    %c0_6 = arith.constant 0 : index
    %c0_7 = arith.constant 0 : index
    %9 = vector.load %arg5[%c0_6, %c0_7] : memref<8x8xf32, #tpu.memory_space<vmem>>, vector<8x8xf32>
    tpu.vector_store %arg5[%c0_6, %c0_7], %8 {strides = array<i32>} : memref<8x8xf32, #tpu.memory_space<vmem>>, vector<8x8xf32>,
    return
  }
  func.func @transform_0(%arg0: i32, %arg1: i32) -> (i32, i32, i32) {
    %c0_i32 = arith.constant 0 : i32
    %c0_i32_0 = arith.constant 0 : i32
    return %arg0, %arg1, %c0_i32 : i32, i32, i32
  }
  func.func @transform_1(%arg0: i32, %arg1: i32) -> (i32, i32) {
    %c0_i32 = arith.constant 0 : i32
    %c0_i32_0 = arith.constant 0 : i32
    return %arg1, %c0_i32 : i32, i32
  }
  func.func @transform_2(%arg0: i32, %arg1: i32) -> (i32, i32) {
    %c0_i32 = arith.constant 0 : i32
    %c0_i32_0 = arith.constant 0 : i32
    return %c0_i32, %arg1 : i32, i32
  }
  func.func @transform_3(%arg0: i32, %arg1: i32) -> (i32, i32) {
    %c0_i32 = arith.constant 0 : i32
    return %arg0, %arg1 : i32, i32
  }
}

module attributes {stable_mosaic.version = 11 : i64} {
  func.func @_groupwise_linear_kernel(%arg0: i32, %arg1: i32, %arg2: memref<8x8x128xf32, #tpu.memory_space<vmem>>, %arg3: memref<8x128xf32, #tpu.memory_space<vmem>>, %arg4: memref<1x8xf32, #tpu.memory_space<vmem>>, %arg5: memref<8x8xf32, #tpu.memory_space<vmem>>) attributes {dimension_semantics = [#tpu.dimension_semantics<parallel>, #tpu.dimension_semantics<parallel>], iteration_bounds = array<i64: 1, 1>, scalar_prefetch = 0 : i64, scratch_operands = 0 : i64, tpu.core_type = #tpu.core_type<tc>, window_params = [{transform_indices = @transform_0, window_bounds = array<i64: 8, 8, 128>}, {transform_indices = @transform_1, window_bounds = array<i64: 8, 128>}, {transform_indices = @transform_2, window_bounds = array<i64: 1, 8>}, {transform_indices = @transform_3, window_bounds = array<i64: 8, 8>}]} {
    %c0 = arith.constant 0 : index
    %c0_0 = arith.constant 0 : index
    %c0_1 = arith.constant 0 : index
    %0 = vector.load %arg2[%c0, %c0_0, %c0_1] : memref<8x8x128xf32, #tpu.memory_space<vmem>>, vector<8x8x128xf32>
    %c0_2 = arith.constant 0 : index
    %c0_3 = arith.constant 0 : index
    %1 = vector.load %arg3[%c0_2, %c0_3] : memref<8x128xf32, #tpu.memory_space<vmem>>, vector<8x128xf32>
    %2 = vector.shape_cast %1 : vector<8x128xf32> to vector<1x8x128xf32>
    %3 = vector.broadcast %2 : vector<1x8x128xf32> to vector<8x8x128xf32>
    %4 = arith.mulf %0, %3 : vector<8x8x128xf32>
    %cst = arith.constant dense<0.000000e+00> : vector<8x8xf32>
    %5 = vector.multi_reduction <add>, %4, %cst [2] : vector<8x8x128xf32> to vector<8x8xf32>
    %c0_4 = arith.constant 0 : index
    %c0_5 = arith.constant 0 : index
    %6 = vector.load %arg4[%c0_4, %c0_5] : memref<1x8xf32, #tpu.memory_space<vmem>>, vector<1x8xf32>
    %7 = vector.broadcast %6 : vector<1x8xf32> to vector<8x8xf32>
    %8 = arith.addf %5, %7 : vector<8x8xf32>
    %c0_6 = arith.constant 0 : index
    %c0_7 = arith.constant 0 : index
    %9 = vector.load %arg5[%c0_6, %c0_7] : memref<8x8xf32, #tpu.memory_space<vmem>>, vector<8x8xf32>
    tpu.vector_store %arg5[%c0_6, %c0_7], %8 {strides = array<i32>} : memref<8x8xf32, #tpu.memory_space<vmem>>, vector<8x8xf32>,
    return
  }
  func.func @transform_0(%arg0: i32, %arg1: i32) -> (i32, i32, i32) {
    %c0_i32 = arith.constant 0 : i32
    %c0_i32_0 = arith.constant 0 : i32
    return %arg0, %arg1, %c0_i32 : i32, i32, i32
  }
  func.func @transform_1(%arg0: i32, %arg1: i32) -> (i32, i32) {
    %c0_i32 = arith.constant 0 : i32
    %c0_i32_0 = arith.constant 0 : i32
    return %arg1, %c0_i32 : i32, i32
  }
  func.func @transform_2(%arg0: i32, %arg1: i32) -> (i32, i32) {
    %c0_i32 = arith.constant 0 : i32
    %c0_i32_0 = arith.constant 0 : i32
    return %c0_i32, %arg1 : i32, i32
  }
  func.func @transform_3(%arg0: i32, %arg1: i32) -> (i32, i32) {
    %c0_i32 = arith.constant 0 : i32
    return %arg0, %arg1 : i32, i32
  }
}

</mosaic_0001>

<llo_original>
// kernel: tpu_custom_call.1
$region0: #{tpu_custom_call.1}
  #allocation0 [shape = 'u32[]', space=smem, size = 0x4, offset = 0x4, fixed_abs, tag = 'smem constant byte address 0x4 - core index']
  #allocation1 [shape = 'u32[72,128]{1,0:T(1,128)}', space=vmem, size = 0x9000, scoped, tag = 'internal scratch']
  %s0 = inlined_call_operand.hbm [shape: f32[8,8,128], index: 0, kind: input, shape index: {}]
  %s1 = inlined_call_operand.hbm [shape: f32[8,128], index: 1, kind: input, shape index: {}]
  %s2 = inlined_call_operand.vmem [shape: f32[1,8], index: 2, kind: input, shape index: {}]
  %s3 = inlined_call_operand.hbm [shape: f32[8,8], index: 3, kind: output, shape index: {}]
  %s4 = sld [smem:[#allocation0]]
  $region30: #{tpu_custom_call.1} parent=0
    _
  %s6 = ssub.s32 1, %s4
  %s7 = scalar_select 0, %s6, %s4
  $region1: #{tpu_custom_call.1} parent=0
    #allocation2 [shape = 'u8[32768]{0}', space=vmem, size = 0x8000, scoped, tag = 'input window, operand 0, single buffered']
    #allocation3 [shape = 's32[1]{0}', space=sflag, size = 0x4, scoped, tag = 'scoped memory for tpu_custom_call.1']
    #allocation4 [shape = 's32[1]{0}', space=sflag, size = 0x4, scoped, tag = 'scoped memory for tpu_custom_call.1']
    #allocation5 [shape = 'u8[4096]{0}', space=vmem, size = 0x1000, scoped, tag = 'input window, operand 1, single buffered']
    #allocation6 [shape = 's32[1]{0}', space=sflag, size = 0x4, scoped, tag = 'scoped memory for tpu_custom_call.1']
    #allocation7 [shape = 'u8[4096]{0}', space=vmem, size = 0x1000, scoped, tag = 'output window, operand 0, single buffered']
    %8 = vsyncpa [#allocation3], 0
    %9 = vsyncpa [#allocation6], 0
    %10 = vsyncpa [#allocation4], 0
    // Predicated region
    $region2: #{tpu_custom_call.1} parent=1 // pred_check
      _
    $region3: #{tpu_custom_call.1} parent=1 // pred_check_branch
      %12 = sbr.rel (0) target = $region5
    $region4: #{tpu_custom_call.1} parent=1 // pred_region
      %14 = vsyncadd [#allocation3], 0
      %s15 = sshll.u32 %s0, 4
      %s16 = int_to_ptr.hbm [resolvable:$true] %s15
      %s17 = sshll.u32 [#allocation2], 4
      %s18 = int_to_ptr.vmem [resolvable:$true] %s17
      %23 = dma.hbm_to_vmem [thread:$0]  %s16, 1024, %s18, [#allocation3], 128, 128, 8
    $region5: #{tpu_custom_call.1} parent=1 // pred_fallthru
      _
    // Predicated region
    $region6: #{tpu_custom_call.1} parent=1 // pred_check
      _
    $region7: #{tpu_custom_call.1} parent=1 // pred_check_branch
      %25 = sbr.rel (0) target = $region9
    $region8: #{tpu_custom_call.1} parent=1 // pred_region
      %27 = vsyncadd [#allocation6], 0
      %s29 = sshll.u32 %s1, 4
      %s30 = int_to_ptr.hbm [resolvable:$true] %s29
      %s31 = sshll.u32 [#allocation5], 4
      %s32 = int_to_ptr.vmem [resolvable:$true] %s31
      %34 = dma.hbm_to_vmem [thread:$0]  %s30, 128, %s32, [#allocation6]
    $region9: #{tpu_custom_call.1} parent=1 // pred_fallthru
      _
    // Predicated region
    $region10: #{tpu_custom_call.1} parent=1 // pred_check
      _
    $region11: #{tpu_custom_call.1} parent=1 // pred_check_branch
      %36 = sbr.rel (0) target = $region13
    $region12: #{tpu_custom_call.1} parent=1 // pred_region
      _
    $region13: #{tpu_custom_call.1} parent=1 // pred_fallthru
      _
    // Predicated region
    $region14: #{tpu_custom_call.1} parent=1 // pred_check
      _
    $region15: #{tpu_custom_call.1} parent=1 // pred_check_branch
      %38 = sbr.rel (0) target = $region17
    $region16: #{tpu_custom_call.1} parent=1 // pred_region
      %40 = dma.done [#allocation3], 1024
    $region17: #{tpu_custom_call.1} parent=1 // pred_fallthru
      _
    // Predicated region
    $region18: #{tpu_custom_call.1} parent=1 // pred_check
      _
    $region19: #{tpu_custom_call.1} parent=1 // pred_check_branch
      %42 = sbr.rel (0) target = $region21
    $region20: #{tpu_custom_call.1} parent=1 // pred_region
      %44 = dma.done [#allocation6], 128
    $region21: #{tpu_custom_call.1} parent=1 // pred_fallthru
      _
    %v45 = vld [vmem:[#allocation2] sm:$0xff]
    %v46 = vld [vmem:[#allocation2 + $0x8] sm:$0xff]
    %v47 = vld [vmem:[#allocation2 + $0x10] sm:$0xff]
    %v48 = vld [vmem:[#allocation2 + $0x18] sm:$0xff]
    %v49 = vld [vmem:[#allocation2 + $0x20] sm:$0xff]
    %v50 = vld [vmem:[#allocation2 + $0x28] sm:$0xff]
    %v51 = vld [vmem:[#allocation2 + $0x30] sm:$0xff]
    %v52 = vld [vmem:[#allocation2 + $0x38] sm:$0xff]
    %v53 = vld [vmem:[#allocation5] sm:$0xff]
    %v54 = vmul.f32 %v45, %v53
    %v55 = vmul.f32 %v46, %v53
    %v56 = vmul.f32 %v47, %v53
    %v57 = vmul.f32 %v48, %v53
    %v58 = vmul.f32 %v49, %v53
    %v59 = vmul.f32 %v50, %v53
    %v60 = vmul.f32 %v51, %v53
    %v61 = vmul.f32 %v52, %v53
    %62 = vadd.xlane.f32.xlu0 %v54
    %v63 = vpop.xlane.xlu0 %62
    %64 = vadd.xlane.f32.xlu0 %v55
    %v65 = vpop.xlane.xlu0 %64
    %66 = vadd.xlane.f32.xlu0 %v56
    %v67 = vpop.xlane.xlu0 %66
    %68 = vadd.xlane.f32.xlu0 %v57
    %v69 = vpop.xlane.xlu0 %68
    %70 = vadd.xlane.f32.xlu0 %v58
    %v71 = vpop.xlane.xlu0 %70
    %72 = vadd.xlane.f32.xlu0 %v59
    %v73 = vpop.xlane.xlu0 %72
    %74 = vadd.xlane.f32.xlu0 %v60
    %v75 = vpop.xlane.xlu0 %74
    %76 = vadd.xlane.f32.xlu0 %v61
    %v77 = vpop.xlane.xlu0 %76
    %v78 = vld [vmem:[%s2] sm:$0x1]
    %v80 = vperm.slane %v78, 0
    %v81 = vlaneseq
    %v82 = vshrl.u32 %v81, 7
    %84 = vset.pattern.permute.xlu0 %v82
    %85 = vperm.xlu0 %84, %v80
    %v86 = vpop.permute.xlu0 %85
    %v88 = vadd.f32 %v63, %v86
    %v89 = vadd.f32 %v65, %v86
    %v90 = vadd.f32 %v67, %v86
    %v91 = vadd.f32 %v69, %v86
    %v92 = vadd.f32 %v71, %v86
    %v93 = vadd.f32 %v73, %v86
    %v94 = vadd.f32 %v75, %v86
    %v95 = vadd.f32 %v77, %v86
    %104 = vset.pattern.permute.xlu0 0
    %105 = vperm.xlu0 %104, %v88
    %v106 = vpop.permute.xlu0 %105
    %107 = vset.pattern.permute.xlu0 0
    %108 = vperm.xlu0 %107, %v89
    %v109 = vpop.permute.xlu0 %108
    %110 = vset.pattern.permute.xlu0 0
    %111 = vperm.xlu0 %110, %v90
    %v112 = vpop.permute.xlu0 %111
    %113 = vset.pattern.permute.xlu0 0
    %114 = vperm.xlu0 %113, %v91
    %v115 = vpop.permute.xlu0 %114
    %116 = vset.pattern.permute.xlu0 0
    %117 = vperm.xlu0 %116, %v92
    %v118 = vpop.permute.xlu0 %117
    %119 = vset.pattern.permute.xlu0 0
    %120 = vperm.xlu0 %119, %v93
    %v121 = vpop.permute.xlu0 %120
    %122 = vset.pattern.permute.xlu0 0
    %123 = vperm.xlu0 %122, %v94
    %v124 = vpop.permute.xlu0 %123
    %125 = vset.pattern.permute.xlu0 0
    %126 = vperm.xlu0 %125, %v95
    %v127 = vpop.permute.xlu0 %126
    %v128 = vlaneseq
    %v129 = vand.u32 %v128, 127
    %v130 = vperm.slane %v106, %v129
    %v131 = vperm.slane %v109, %v129
    %v132 = vperm.slane %v112, %v129
    %v133 = vperm.slane %v115, %v129
    %v134 = vperm.slane %v118, %v129
    %v135 = vperm.slane %v121, %v129
    %v136 = vperm.slane %v124, %v129
    %v137 = vperm.slane %v127, %v129
    %vm138 = vcmask 1041409
    %v139 = vsel %vm138, %v131, %v130
    %vm140 = vcmask 1042434
    %v141 = vsel %vm140, %v132, %v139
    %vm142 = vcmask 1043459
    %v143 = vsel %vm142, %v133, %v141
    %vm144 = vcmask 1044484
    %v145 = vsel %vm144, %v134, %v143
    %vm146 = vcmask 1045509
    %v147 = vsel %vm146, %v135, %v145
    %vm148 = vcmask 1046534
    %v149 = vsel %vm148, %v136, %v147
    %vm150 = vcmask 1047559
    %v151 = vsel %vm150, %v137, %v149
    %vm153 = vcmask 64512
    %154 = vst.msk [vmem:[#allocation7] sm:$0xff] %vm153, %v151
    // Predicated region
    $region22: #{tpu_custom_call.1} parent=1 // pred_check
      _
    $region23: #{tpu_custom_call.1} parent=1 // pred_check_branch
      %156 = sbr.rel (0) target = $region25
    $region24: #{tpu_custom_call.1} parent=1 // pred_region
      %158 = vsyncadd [#allocation4], 0
      %s160 = sshll.u32 [#allocation7], 4
      %s161 = int_to_ptr.vmem [resolvable:$true] %s160
      %s162 = sshll.u32 %s3, 4
      %s163 = int_to_ptr.hbm [resolvable:$true] %s162
      %165 = dma.vmem_to_hbm [thread:$0]  %s161, 128, %s163, [#allocation4]
    $region25: #{tpu_custom_call.1} parent=1 // pred_fallthru
      _
    // Predicated region
    $region26: #{tpu_custom_call.1} parent=1 // pred_check
      _
    $region27: #{tpu_custom_call.1} parent=1 // pred_check_branch
      %167 = sbr.rel (0) target = $region29
    $region28: #{tpu_custom_call.1} parent=1 // pred_region
      %169 = dma.done [#allocation4], 128
    $region29: #{tpu_custom_call.1} parent=1 // pred_fallthru
      _
    %170 = vsyncpa [#allocation3], 1
    %171 = vsyncpa [#allocation6], 1
    %172 = vsyncpa [#allocation4], 1

// kernel: tpu_custom_call.1
$region0: #{tpu_custom_call.1}
  #allocation0 [shape = 'u32[]', space=smem, size = 0x4, offset = 0x4, fixed_abs, tag = 'smem constant byte address 0x4 - core index']
  #allocation1 [shape = 'u32[72,128]{1,0:T(1,128)}', space=vmem, size = 0x9000, scoped, tag = 'internal scratch']
  %s0 = inlined_call_operand.hbm [shape: f32[8,8,128], index: 0, kind: input, shape index: {}]
  %s1 = inlined_call_operand.hbm [shape: f32[8,128], index: 1, kind: input, shape index: {}]
  %s2 = inlined_call_operand.vmem [shape: f32[1,8], index: 2, kind: input, shape index: {}]
  %s3 = inlined_call_operand.hbm [shape: f32[8,8], index: 3, kind: output, shape index: {}]
  %s4 = sld [smem:[#allocation0]]
  $region30: #{tpu_custom_call.1} parent=0
    _
  %s6 = ssub.s32 1, %s4
  %s7 = scalar_select 0, %s6, %s4
  $region1: #{tpu_custom_call.1} parent=0
    #allocation2 [shape = 'u8[32768]{0}', space=vmem, size = 0x8000, scoped, tag = 'input window, operand 0, single buffered']
    #allocation3 [shape = 's32[1]{0}', space=sflag, size = 0x4, scoped, tag = 'scoped memory for tpu_custom_call.1']
    #allocation4 [shape = 's32[1]{0}', space=sflag, size = 0x4, scoped, tag = 'scoped memory for tpu_custom_call.1']
    #allocation5 [shape = 'u8[4096]{0}', space=vmem, size = 0x1000, scoped, tag = 'input window, operand 1, single buffered']
    #allocation6 [shape = 's32[1]{0}', space=sflag, size = 0x4, scoped, tag = 'scoped memory for tpu_custom_call.1']
    #allocation7 [shape = 'u8[4096]{0}', space=vmem, size = 0x1000, scoped, tag = 'output window, operand 0, single buffered']
    %8 = vsyncpa [#allocation3], 0
    %9 = vsyncpa [#allocation6], 0
    %10 = vsyncpa [#allocation4], 0
    // Predicated region
    $region2: #{tpu_custom_call.1} parent=1 // pred_check
      _
    $region3: #{tpu_custom_call.1} parent=1 // pred_check_branch
      %12 = sbr.rel (0) target = $region5
    $region4: #{tpu_custom_call.1} parent=1 // pred_region
      %14 = vsyncadd [#allocation3], 0
      %s15 = sshll.u32 %s0, 4
      %s16 = int_to_ptr.hbm [resolvable:$true] %s15
      %s17 = sshll.u32 [#allocation2], 4
      %s18 = int_to_ptr.vmem [resolvable:$true] %s17
      %23 = dma.hbm_to_vmem [thread:$0]  %s16, 1024, %s18, [#allocation3], 128, 128, 8
    $region5: #{tpu_custom_call.1} parent=1 // pred_fallthru
      _
    // Predicated region
    $region6: #{tpu_custom_call.1} parent=1 // pred_check
      _
    $region7: #{tpu_custom_call.1} parent=1 // pred_check_branch
      %25 = sbr.rel (0) target = $region9
    $region8: #{tpu_custom_call.1} parent=1 // pred_region
      %27 = vsyncadd [#allocation6], 0
      %s29 = sshll.u32 %s1, 4
      %s30 = int_to_ptr.hbm [resolvable:$true] %s29
      %s31 = sshll.u32 [#allocation5], 4
      %s32 = int_to_ptr.vmem [resolvable:$true] %s31
      %34 = dma.hbm_to_vmem [thread:$0]  %s30, 128, %s32, [#allocation6]
    $region9: #{tpu_custom_call.1} parent=1 // pred_fallthru
      _
    // Predicated region
    $region10: #{tpu_custom_call.1} parent=1 // pred_check
      _
    $region11: #{tpu_custom_call.1} parent=1 // pred_check_branch
      %36 = sbr.rel (0) target = $region13
    $region12: #{tpu_custom_call.1} parent=1 // pred_region
      _
    $region13: #{tpu_custom_call.1} parent=1 // pred_fallthru
      _
    // Predicated region
    $region14: #{tpu_custom_call.1} parent=1 // pred_check
      _
    $region15: #{tpu_custom_call.1} parent=1 // pred_check_branch
      %38 = sbr.rel (0) target = $region17
    $region16: #{tpu_custom_call.1} parent=1 // pred_region
      %40 = dma.done [#allocation3], 1024
    $region17: #{tpu_custom_call.1} parent=1 // pred_fallthru
      _
    // Predicated region
    $region18: #{tpu_custom_call.1} parent=1 // pred_check
      _
    $region19: #{tpu_custom_call.1} parent=1 // pred_check_branch
      %42 = sbr.rel (0) target = $region21
    $region20: #{tpu_custom_call.1} parent=1 // pred_region
      %44 = dma.done [#allocation6], 128
    $region21: #{tpu_custom_call.1} parent=1 // pred_fallthru
      _
    %v45 = vld [vmem:[#allocation2] sm:$0xff]
    %v46 = vld [vmem:[#allocation2 + $0x8] sm:$0xff]
    %v47 = vld [vmem:[#allocation2 + $0x10] sm:$0xff]
    %v48 = vld [vmem:[#allocation2 + $0x18] sm:$0xff]
    %v49 = vld [vmem:[#allocation2 + $0x20] sm:$0xff]
    %v50 = vld [vmem:[#allocation2 + $0x28] sm:$0xff]
    %v51 = vld [vmem:[#allocation2 + $0x30] sm:$0xff]
    %v52 = vld [vmem:[#allocation2 + $0x38] sm:$0xff]
    %v53 = vld [vmem:[#allocation5] sm:$0xff]
    %v54 = vmul.f32 %v45, %v53
    %v55 = vmul.f32 %v46, %v53
    %v56 = vmul.f32 %v47, %v53
    %v57 = vmul.f32 %v48, %v53
    %v58 = vmul.f32 %v49, %v53
    %v59 = vmul.f32 %v50, %v53
    %v60 = vmul.f32 %v51, %v53
    %v61 = vmul.f32 %v52, %v53
    %62 = vadd.xlane.f32.xlu0 %v54
    %v63 = vpop.xlane.xlu0 %62
    %64 = vadd.xlane.f32.xlu0 %v55
    %v65 = vpop.xlane.xlu0 %64
    %66 = vadd.xlane.f32.xlu0 %v56
    %v67 = vpop.xlane.xlu0 %66
    %68 = vadd.xlane.f32.xlu0 %v57
    %v69 = vpop.xlane.xlu0 %68
    %70 = vadd.xlane.f32.xlu0 %v58
    %v71 = vpop.xlane.xlu0 %70
    %72 = vadd.xlane.f32.xlu0 %v59
    %v73 = vpop.xlane.xlu0 %72
    %74 = vadd.xlane.f32.xlu0 %v60
    %v75 = vpop.xlane.xlu0 %74
    %76 = vadd.xlane.f32.xlu0 %v61
    %v77 = vpop.xlane.xlu0 %76
    %v78 = vld [vmem:[%s2] sm:$0x1]
    %v80 = vperm.slane %v78, 0
    %v81 = vlaneseq
    %v82 = vshrl.u32 %v81, 7
    %84 = vset.pattern.permute.xlu0 %v82
    %85 = vperm.xlu0 %84, %v80
    %v86 = vpop.permute.xlu0 %85
    %v88 = vadd.f32 %v63, %v86
    %v89 = vadd.f32 %v65, %v86
    %v90 = vadd.f32 %v67, %v86
    %v91 = vadd.f32 %v69, %v86
    %v92 = vadd.f32 %v71, %v86
    %v93 = vadd.f32 %v73, %v86
    %v94 = vadd.f32 %v75, %v86
    %v95 = vadd.f32 %v77, %v86
    %104 = vset.pattern.permute.xlu0 0
    %105 = vperm.xlu0 %104, %v88
    %v106 = vpop.permute.xlu0 %105
    %107 = vset.pattern.permute.xlu0 0
    %108 = vperm.xlu0 %107, %v89
    %v109 = vpop.permute.xlu0 %108
    %110 = vset.pattern.permute.xlu0 0
    %111 = vperm.xlu0 %110, %v90
    %v112 = vpop.permute.xlu0 %111
    %113 = vset.pattern.permute.xlu0 0
    %114 = vperm.xlu0 %113, %v91
    %v115 = vpop.permute.xlu0 %114
    %116 = vset.pattern.permute.xlu0 0
    %117 = vperm.xlu0 %116, %v92
    %v118 = vpop.permute.xlu0 %117
    %119 = vset.pattern.permute.xlu0 0
    %120 = vperm.xlu0 %119, %v93
    %v121 = vpop.permute.xlu0 %120
    %122 = vset.pattern.permute.xlu0 0
    %123 = vperm.xlu0 %122, %v94
    %v124 = vpop.permute.xlu0 %123
    %125 = vset.pattern.permute.xlu0 0
    %126 = vperm.xlu0 %125, %v95
    %v127 = vpop.permute.xlu0 %126
    %v128 = vlaneseq
    %v129 = vand.u32 %v128, 127
    %v130 = vperm.slane %v106, %v129
    %v131 = vperm.slane %v109, %v129
    %v132 = vperm.slane %v112, %v129
    %v133 = vperm.slane %v115, %v129
    %v134 = vperm.slane %v118, %v129
    %v135 = vperm.slane %v121, %v129
    %v136 = vperm.slane %v124, %v129
    %v137 = vperm.slane %v127, %v129
    %vm138 = vcmask 1041409
    %v139 = vsel %vm138, %v131, %v130
    %vm140 = vcmask 1042434
    %v141 = vsel %vm140, %v132, %v139
    %vm142 = vcmask 1043459
    %v143 = vsel %vm142, %v133, %v141
    %vm144 = vcmask 1044484
    %v145 = vsel %vm144, %v134, %v143
    %vm146 = vcmask 1045509
    %v147 = vsel %vm146, %v135, %v145
    %vm148 = vcmask 1046534
    %v149 = vsel %vm148, %v136, %v147
    %vm150 = vcmask 1047559
    %v151 = vsel %vm150, %v137, %v149
    %vm153 = vcmask 64512
    %154 = vst.msk [vmem:[#allocation7] sm:$0xff] %vm153, %v151
    // Predicated region
    $region22: #{tpu_custom_call.1} parent=1 // pred_check
      _
    $region23: #{tpu_custom_call.1} parent=1 // pred_check_branch
      %156 = sbr.rel (0) target = $region25
    $region24: #{tpu_custom_call.1} parent=1 // pred_region
      %158 = vsyncadd [#allocation4], 0
      %s160 = sshll.u32 [#allocation7], 4
      %s161 = int_to_ptr.vmem [resolvable:$true] %s160
      %s162 = sshll.u32 %s3, 4
      %s163 = int_to_ptr.hbm [resolvable:$true] %s162
      %165 = dma.vmem_to_hbm [thread:$0]  %s161, 128, %s163, [#allocation4]
    $region25: #{tpu_custom_call.1} parent=1 // pred_fallthru
      _
    // Predicated region
    $region26: #{tpu_custom_call.1} parent=1 // pred_check
      _
    $region27: #{tpu_custom_call.1} parent=1 // pred_check_branch
      %167 = sbr.rel (0) target = $region29
    $region28: #{tpu_custom_call.1} parent=1 // pred_region
      %169 = dma.done [#allocation4], 128
    $region29: #{tpu_custom_call.1} parent=1 // pred_fallthru
      _
    %170 = vsyncpa [#allocation3], 1
    %171 = vsyncpa [#allocation6], 1
    %172 = vsyncpa [#allocation4], 1

</llo_original>
